<compile_context>
chip_gen: v5e
topology: v5e:2x2
jax: 0.10.0
libtpu: 0.0.40
codegen_flags: <defaults>
</compile_context>

<pallas_src>
import functools

import jax
import jax.numpy as jnp
from jax.experimental import pallas as pl
from jax.experimental.pallas import tpu as pltpu

BN_EPS = 1e-5


def _round_up(x, m):
    return ((x + m - 1) // m) * m


def choose_tiles(in_dim, class_num, td_pref=512, tc_pref=512):
    """Pick lane-dense tile sizes (multiples of 128, preferring 256-multiples
    via the 512 default for the v6e/v7x 2x256 MXU) and the padded dims they
    imply.  Small dims collapse to a single tile covering the padded dim."""
    d_lane = _round_up(in_dim, 128)
    td = d_lane if d_lane <= td_pref else td_pref
    d_pad = _round_up(in_dim, td)
    c_lane = _round_up(class_num, 128)
    tc = c_lane if c_lane <= tc_pref else tc_pref
    c_pad = _round_up(class_num, tc)
    return td, tc, d_pad, c_pad


def _vmem_limit_bytes(working_set_bytes):
    # Headroom on top of the estimated double-buffered working set, capped so
    # the config also fits v7x's 64 MiB-per-TensorCore physical VMEM.
    return int(min(max(2 * working_set_bytes + (4 << 20), 16 << 20), 48 << 20))


# ---------------------------------------------------------------------------
# Pass 1: BatchNorm1d (training mode, batch statistics, biased variance).
# grid = (D_tiles,); each step normalizes one lane-dense (n_pad, td) tile.
# Per-feature stats => each D tile is fully independent ("parallel").
# ---------------------------------------------------------------------------
def _bn_kernel(x_ref, gamma_ref, beta_ref, feat_ref, *, n_valid):
    x = x_ref[...].astype(jnp.float32)          # (n_pad, td)
    n_pad = x.shape[0]

    if n_valid == n_pad:
        mean = jnp.mean(x, axis=0, keepdims=True)
        centered = x - mean
        var = jnp.mean(centered * centered, axis=0, keepdims=True)
    else:
        # Batch was zero-padded up to a sublane multiple; mask pad rows out of
        # the statistics (static branch: n_valid is a trace-time constant).
        row = jax.lax.broadcasted_iota(jnp.int32, x.shape, 0)
        mask = (row < n_valid).astype(jnp.float32)
        inv_n = 1.0 / float(n_valid)
        mean = jnp.sum(x * mask, axis=0, keepdims=True) * inv_n
        centered = x - mean
        var = jnp.sum((centered * mask) ** 2, axis=0, keepdims=True) * inv_n

    inv_std = jax.lax.rsqrt(var + BN_EPS)
    feat = centered * inv_std * gamma_ref[...] + beta_ref[...]
    feat_ref[...] = feat.astype(feat_ref.dtype)


# ---------------------------------------------------------------------------
# Pass 2: classifier, cls_score = feature @ W^T + b.
# grid = (C_tiles, D_tiles): class tiles "parallel" (independent output
# blocks; megacore-shardable), D tiles "arbitrary" (reduction, innermost).
# The f32 score block is resident across the reduction, so we accumulate
# directly into it -- no VMEM scratch accumulator.
# ---------------------------------------------------------------------------
def _classifier_kernel(feat_ref, w_ref, b_ref, score_ref):
    k = pl.program_id(1)

    @pl.when(k == 0)
    def _():
        # Initialize the resident score block with the (broadcast) bias.
        score_ref[...] = jnp.zeros_like(score_ref) + b_ref[...]

    score_ref[...] += jnp.dot(feat_ref[...].astype(w_ref.dtype), w_ref[...],
                              preferred_element_type=jnp.float32)


def prepare_params(gamma, beta, weight, bias, *, td_pref=512, tc_pref=512,
                   weight_dtype=jnp.bfloat16):
    """One-time parameter prep (keep OUT of the per-step hot path): transpose
    the classifier weight to (D, C), cast it to bf16 (halves HBM traffic for
    the dominant operand, native MXU path), and zero-pad D / C up to tile
    multiples so every weight / score tile is lane-dense."""
    class_num, in_dim = weight.shape
    _, _, d_pad, c_pad = choose_tiles(in_dim, class_num, td_pref, tc_pref)

    w_t = jnp.zeros((d_pad, c_pad), weight_dtype)
    w_t = w_t.at[:in_dim, :class_num].set(weight.T.astype(weight_dtype))
    gamma_p = jnp.zeros((1, d_pad), jnp.float32).at[0, :in_dim].set(
        gamma.astype(jnp.float32))
    beta_p = jnp.zeros((1, d_pad), jnp.float32).at[0, :in_dim].set(
        beta.astype(jnp.float32))
    bias_p = jnp.zeros((1, c_pad), jnp.float32).at[0, :class_num].set(
        bias.astype(jnp.float32))
    return gamma_p, beta_p, w_t, bias_p


def bn_classifier(x, gamma_p, beta_p, w_t, bias_p, *, class_num,
                  td_pref=512, tc_pref=512):
    """x: (N, D). Params must come from prepare_params (pre-transposed,
    pre-padded, bf16 weight). Returns (feature (N, D), cls_score (N, C)),
    matching PyTorch BNClassifier training-mode forward."""
    n, d = x.shape
    td, tc, d_pad, c_pad = choose_tiles(d, class_num, td_pref, tc_pref)
    assert w_t.shape == (d_pad, c_pad), "params prepared with different tiling"
    n_pad = _round_up(n, 8)                      # f32 sublane multiple

    x_p = x.astype(jnp.float32)
    if (n_pad, d_pad) != (n, d):
        x_p = jnp.zeros((n_pad, d_pad), jnp.float32).at[:n, :d].set(x_p)

    # -------------------- Pass 1: BatchNorm over D tiles --------------------
    bn_vmem = 2 * (n_pad * td * 4 + 2 * td * 4 + n_pad * td * 4)
    feat = pl.pallas_call(
        functools.partial(_bn_kernel, n_valid=n),
        out_shape=jax.ShapeDtypeStruct((n_pad, d_pad), x.dtype),
        grid_spec=pltpu.PrefetchScalarGridSpec(
            num_scalar_prefetch=0,
            grid=(d_pad // td,),
            in_specs=[
                pl.BlockSpec((n_pad, td), lambda k: (0, k)),   # x
                pl.BlockSpec((1, td), lambda k: (0, k)),       # gamma
                pl.BlockSpec((1, td), lambda k: (0, k)),       # beta
            ],
            out_specs=pl.BlockSpec((n_pad, td), lambda k: (0, k)),
        ),
        compiler_params=pltpu.CompilerParams(
            dimension_semantics=("parallel",),
            vmem_limit_bytes=_vmem_limit_bytes(bn_vmem),
        ),
    )(x_p, gamma_p, beta_p)

    # ----------------- Pass 2: cls_score = feat @ W^T + bias ----------------
    # Note: on v7x, pltpu.CORE_PARALLEL on the class axis would guarantee
    # megacore sharding of the independent class tiles; "parallel" kept here
    # for portability.  pl.Buffered(3) on the W spec is a further option if a
    # profile shows exposed weight-DMA waits (per-step compute is small).
    mm_vmem = 2 * (n_pad * td * 4 + td * tc * 2 + tc * 4 + n_pad * tc * 4)
    score = pl.pallas_call(
        _classifier_kernel,
        out_shape=jax.ShapeDtypeStruct((n_pad, c_pad), jnp.float32),
        grid_spec=pltpu.PrefetchScalarGridSpec(
            num_scalar_prefetch=0,
            grid=(c_pad // tc, d_pad // td),     # (class tiles, feature tiles)
            in_specs=[
                pl.BlockSpec((n_pad, td), lambda j, k: (0, k)),   # feature
                pl.BlockSpec((td, tc), lambda j, k: (k, j)),      # W^T (bf16)
                pl.BlockSpec((1, tc), lambda j, k: (0, j)),       # bias
            ],
            out_specs=pl.BlockSpec((n_pad, tc), lambda j, k: (0, j)),
        ),
        compiler_params=pltpu.CompilerParams(
            dimension_semantics=("parallel", "arbitrary"),
            vmem_limit_bytes=_vmem_limit_bytes(mm_vmem),
        ),
    )(feat, w_t, bias_p)

    return feat[:n, :d], score[:n, :class_num]


def init_params(key, in_dim, class_num):
    """Deterministic init matching weights_init_kaiming / weights_init_classifier."""
    gamma = jnp.ones((in_dim,), jnp.float32)          # BN weight = 1
    beta = jnp.zeros((in_dim,), jnp.float32)          # BN bias = 0
    weight = 0.001 * jax.random.normal(key, (class_num, in_dim), jnp.float32)
    bias = jnp.zeros((class_num,), jnp.float32)       # Linear bias = 0
    return gamma, beta, weight, bias


if __name__ == "__main__":
    key = jax.random.PRNGKey(0)
    kx, kw = jax.random.split(key)

    # Ragged on purpose (exercises the N/D/C padding + masked-stats paths).
    N, IN_DIM, CLASS_NUM = 6, 200, 151
    x = jax.random.normal(kx, (N, IN_DIM), jnp.float32)
    gamma, beta, weight, bias = init_params(kw, IN_DIM, CLASS_NUM)

    # One-time prep, hoisted out of the hot path (transpose + bf16 cast + pad).
    gamma_p, beta_p, w_t, bias_p = prepare_params(gamma, beta, weight, bias)

    feat, score = bn_classifier(x, gamma_p, beta_p, w_t, bias_p,
                                class_num=CLASS_NUM)
    jax.block_until_ready((feat, score))

    # Reference: PyTorch training-mode BN (batch stats, biased var) + Linear.
    mean = x.mean(0, keepdims=True)
    var = ((x - mean) ** 2).mean(0, keepdims=True)
    feat_ref = (x - mean) / jnp.sqrt(var + BN_EPS) * gamma + beta
    score_ref = feat_ref @ weight.T + bias

    assert feat.shape == (N, IN_DIM) and score.shape == (N, CLASS_NUM)
    assert jnp.allclose(feat, feat_ref, atol=5e-4), "feature mismatch"
    # Classifier weight is streamed in bf16 (f32 accumulation) -> looser tol.
    assert jnp.allclose(score, score_ref, atol=3e-3, rtol=2e-2), "cls_score mismatch"

    print("KERNEL_OK")
</pallas_src>

<mosaic_0001>
module attributes {stable_mosaic.version = 11 : i64} {
  func.func @_bn_kernel(%arg0: i32, %arg1: memref<8x256xf32, #tpu.memory_space<vmem>>, %arg2: memref<1x256xf32, #tpu.memory_space<vmem>>, %arg3: memref<1x256xf32, #tpu.memory_space<vmem>>, %arg4: memref<8x256xf32, #tpu.memory_space<vmem>>) attributes {dimension_semantics = [#tpu.dimension_semantics<parallel>], iteration_bounds = array<i64: 1>, scalar_prefetch = 0 : i64, scratch_operands = 0 : i64, tpu.core_type = #tpu.core_type<tc>, window_params = [{transform_indices = @transform_0, window_bounds = array<i64: 8, 256>}, {transform_indices = @transform_1, window_bounds = array<i64: 1, 256>}, {transform_indices = @transform_2, window_bounds = array<i64: 1, 256>}, {transform_indices = @transform_3, window_bounds = array<i64: 8, 256>}]} {
    %c0 = arith.constant 0 : index
    %c0_0 = arith.constant 0 : index
    %0 = vector.load %arg1[%c0, %c0_0] : memref<8x256xf32, #tpu.memory_space<vmem>>, vector<8x256xf32>
    %1 = tpu.iota {dimensions = array<i32: 0>} : vector<8x256xi32>
    %c6_i32 = arith.constant 6 : i32
    %2 = vector.broadcast %c6_i32 : i32 to vector<8x256xi32>
    %3 = arith.cmpi slt, %1, %2 : vector<8x256xi32>
    %4 = arith.extui %3 : vector<8x256xi1> to vector<8x256xi32>
    %5 = arith.sitofp %4 : vector<8x256xi32> to vector<8x256xf32>
    %6 = arith.mulf %0, %5 : vector<8x256xf32>
    %cst = arith.constant dense<0.000000e+00> : vector<256xf32>
    %7 = vector.multi_reduction <add>, %6, %cst [0] : vector<8x256xf32> to vector<256xf32>
    %8 = vector.shape_cast %7 : vector<256xf32> to vector<1x256xf32>
    %cst_1 = arith.constant 0.166666672 : f32
    %9 = vector.broadcast %cst_1 : f32 to vector<1x256xf32>
    %10 = arith.mulf %8, %9 : vector<1x256xf32>
    %11 = vector.broadcast %10 : vector<1x256xf32> to vector<8x256xf32>
    %12 = arith.subf %0, %11 : vector<8x256xf32>
    %13 = arith.mulf %12, %5 : vector<8x256xf32>
    %14 = arith.mulf %13, %13 : vector<8x256xf32>
    %cst_2 = arith.constant dense<0.000000e+00> : vector<256xf32>
    %15 = vector.multi_reduction <add>, %14, %cst_2 [0] : vector<8x256xf32> to vector<256xf32>
    %16 = vector.shape_cast %15 : vector<256xf32> to vector<1x256xf32>
    %cst_3 = arith.constant 0.166666672 : f32
    %17 = vector.broadcast %cst_3 : f32 to vector<1x256xf32>
    %18 = arith.mulf %16, %17 : vector<1x256xf32>
    %cst_4 = arith.constant 9.99999974E-6 : f32
    %19 = vector.broadcast %cst_4 : f32 to vector<1x256xf32>
    %20 = arith.addf %18, %19 : vector<1x256xf32>
    %21 = math.rsqrt %20 : vector<1x256xf32>
    %22 = vector.broadcast %21 : vector<1x256xf32> to vector<8x256xf32>
    %23 = arith.mulf %12, %22 : vector<8x256xf32>
    %c0_5 = arith.constant 0 : index
    %c0_6 = arith.constant 0 : index
    %24 = vector.load %arg2[%c0_5, %c0_6] : memref<1x256xf32, #tpu.memory_space<vmem>>, vector<1x256xf32>
    %25 = vector.broadcast %24 : vector<1x256xf32> to vector<8x256xf32>
    %26 = arith.mulf %23, %25 : vector<8x256xf32>
    %c0_7 = arith.constant 0 : index
    %c0_8 = arith.constant 0 : index
    %27 = vector.load %arg3[%c0_7, %c0_8] : memref<1x256xf32, #tpu.memory_space<vmem>>, vector<1x256xf32>
    %28 = vector.broadcast %27 : vector<1x256xf32> to vector<8x256xf32>
    %29 = arith.addf %26, %28 : vector<8x256xf32>
    %c0_9 = arith.constant 0 : index
    %c0_10 = arith.constant 0 : index
    %30 = vector.load %arg4[%c0_9, %c0_10] : memref<8x256xf32, #tpu.memory_space<vmem>>, vector<8x256xf32>
    tpu.vector_store %arg4[%c0_9, %c0_10], %29 {strides = array<i32>} : memref<8x256xf32, #tpu.memory_space<vmem>>, vector<8x256xf32>,
    return
  }
  func.func @transform_0(%arg0: i32) -> (i32, i32) {
    %c0_i32 = arith.constant 0 : i32
    %c0_i32_0 = arith.constant 0 : i32
    return %c0_i32, %arg0 : i32, i32
  }
  func.func @transform_1(%arg0: i32) -> (i32, i32) {
    %c0_i32 = arith.constant 0 : i32
    %c0_i32_0 = arith.constant 0 : i32
    return %c0_i32, %arg0 : i32, i32
  }
  func.func @transform_2(%arg0: i32) -> (i32, i32) {
    %c0_i32 = arith.constant 0 : i32
    %c0_i32_0 = arith.constant 0 : i32
    return %c0_i32, %arg0 : i32, i32
  }
  func.func @transform_3(%arg0: i32) -> (i32, i32) {
    %c0_i32 = arith.constant 0 : i32
    %c0_i32_0 = arith.constant 0 : i32
    return %c0_i32, %arg0 : i32, i32
  }
}

</mosaic_0001>

<llo_original>
// kernel: tpu_custom_call.1
$region0: #{tpu_custom_call.1}
  #allocation0 [shape = 'u32[]', space=smem, size = 0x4, offset = 0x4, fixed_abs, tag = 'smem constant byte address 0x4 - core index']
  #allocation1 [shape = 'u32[72,128]{1,0:T(1,128)}', space=vmem, size = 0x9000, scoped, tag = 'internal scratch']
  %s0 = inlined_call_operand.hbm [shape: f32[8,256], index: 0, kind: input, shape index: {}]
  %s1 = inlined_call_operand.hbm [shape: f32[1,256], index: 1, kind: input, shape index: {}]
  %s2 = inlined_call_operand.hbm [shape: f32[1,256], index: 2, kind: input, shape index: {}]
  %s3 = inlined_call_operand.hbm [shape: f32[8,256], index: 3, kind: output, shape index: {}]
  %s4 = sld [smem:[#allocation0]]
  $region34: #{tpu_custom_call.1} parent=0
    _
  %s6 = ssub.s32 1, %s4
  %s7 = scalar_select 0, %s6, %s4
  $region1: #{tpu_custom_call.1} parent=0
    #allocation2 [shape = 'u8[8192]{0}', space=vmem, size = 0x2000, scoped, tag = 'input window, operand 0, single buffered']
    #allocation3 [shape = 's32[1]{0}', space=sflag, size = 0x4, scoped, tag = 'scoped memory for tpu_custom_call.1']
    #allocation4 [shape = 's32[1]{0}', space=sflag, size = 0x4, scoped, tag = 'scoped memory for tpu_custom_call.1']
    #allocation5 [shape = 'u8[1024]{0}', space=vmem, size = 0x400, scoped, tag = 'input window, operand 1, single buffered']
    #allocation6 [shape = 's32[1]{0}', space=sflag, size = 0x4, scoped, tag = 'scoped memory for tpu_custom_call.1']
    #allocation7 [shape = 'u8[1024]{0}', space=vmem, size = 0x400, scoped, tag = 'input window, operand 2, single buffered']
    #allocation8 [shape = 'u8[8192]{0}', space=vmem, size = 0x2000, scoped, tag = 'output window, operand 0, single buffered']
    %8 = vsyncpa [#allocation3], 0
    %9 = vsyncpa [#allocation6], 0
    %10 = vsyncpa [#allocation4], 0
    // Predicated region
    $region2: #{tpu_custom_call.1} parent=1 // pred_check
      _
    $region3: #{tpu_custom_call.1} parent=1 // pred_check_branch
      %12 = sbr.rel (0) target = $region5
    $region4: #{tpu_custom_call.1} parent=1 // pred_region
      %14 = vsyncadd [#allocation3], 0
      %s16 = sshll.u32 %s0, 4
      %s17 = int_to_ptr.hbm [resolvable:$true] %s16
      %s18 = sshll.u32 [#allocation2], 4
      %s19 = int_to_ptr.vmem [resolvable:$true] %s18
      %21 = dma.hbm_to_vmem [thread:$0]  %s17, 256, %s19, [#allocation3]
    $region5: #{tpu_custom_call.1} parent=1 // pred_fallthru
      _
    // Predicated region
    $region6: #{tpu_custom_call.1} parent=1 // pred_check
      _
    $region7: #{tpu_custom_call.1} parent=1 // pred_check_branch
      %23 = sbr.rel (0) target = $region9
    $region8: #{tpu_custom_call.1} parent=1 // pred_region
      %25 = vsyncadd [#allocation6], 0
      %s27 = sshll.u32 %s1, 4
      %s28 = int_to_ptr.hbm [resolvable:$true] %s27
      %s29 = sshll.u32 [#allocation5], 4
      %s30 = int_to_ptr.vmem [resolvable:$true] %s29
      %32 = dma.hbm_to_vmem [thread:$0]  %s28, 32, %s30, [#allocation6]
    $region9: #{tpu_custom_call.1} parent=1 // pred_fallthru
      _
    // Predicated region
    $region10: #{tpu_custom_call.1} parent=1 // pred_check
      _
    $region11: #{tpu_custom_call.1} parent=1 // pred_check_branch
      %34 = sbr.rel (0) target = $region13
    $region12: #{tpu_custom_call.1} parent=1 // pred_region
      %36 = vsyncadd [#allocation6], 0
      %s38 = sshll.u32 %s2, 4
      %s39 = int_to_ptr.hbm [resolvable:$true] %s38
      %s40 = sshll.u32 [#allocation7], 4
      %s41 = int_to_ptr.vmem [resolvable:$true] %s40
      %43 = dma.hbm_to_vmem [thread:$0]  %s39, 32, %s41, [#allocation6]
    $region13: #{tpu_custom_call.1} parent=1 // pred_fallthru
      _
    // Predicated region
    $region14: #{tpu_custom_call.1} parent=1 // pred_check
      _
    $region15: #{tpu_custom_call.1} parent=1 // pred_check_branch
      %45 = sbr.rel (0) target = $region17
    $region16: #{tpu_custom_call.1} parent=1 // pred_region
      %47 = dma.done [#allocation3], 256
    $region17: #{tpu_custom_call.1} parent=1 // pred_fallthru
      _
    // Predicated region
    $region18: #{tpu_custom_call.1} parent=1 // pred_check
      _
    $region19: #{tpu_custom_call.1} parent=1 // pred_check_branch
      %49 = sbr.rel (0) target = $region21
    $region20: #{tpu_custom_call.1} parent=1 // pred_region
      %51 = dma.done [#allocation6], 32
    $region21: #{tpu_custom_call.1} parent=1 // pred_fallthru
      _
    // Predicated region
    $region22: #{tpu_custom_call.1} parent=1 // pred_check
      _
    $region23: #{tpu_custom_call.1} parent=1 // pred_check_branch
      %53 = sbr.rel (0) target = $region25
    $region24: #{tpu_custom_call.1} parent=1 // pred_region
      %55 = dma.done [#allocation6], 32
    $region25: #{tpu_custom_call.1} parent=1 // pred_fallthru
      _
    %v56 = vld [vmem:[#allocation2] sm:$0xff]
    %v57 = vld [vmem:[#allocation2 + $0x8] sm:$0xff]
    %v58 = vlaneseq
    %v59 = vshrl.u32 %v58, 7
    %vm60 = vcmp.lt.s32.totalorder %v59, 6
    %v61 = vsel %vm60, 1, 0
    %v62 = vcvt.s32.f32 %v61
    %v63 = vmul.f32 %v56, %v62
    %v64 = vmul.f32 %v57, %v62
    %v65 = vrot.slane %v63, 4
    %v66 = vadd.f32 %v63, %v65
    %v67 = vrot.slane %v66, 2
    %v68 = vadd.f32 %v66, %v67
    %v69 = vrot.slane %v68, 1
    %v70 = vadd.f32 %v68, %v69
    %v71 = vrot.slane %v64, 4
    %v72 = vadd.f32 %v64, %v71
    %v73 = vrot.slane %v72, 2
    %v74 = vadd.f32 %v72, %v73
    %v75 = vrot.slane %v74, 1
    %v76 = vadd.f32 %v74, %v75
    %v77 = vmul.f32 %v70, 0.16666667
    %v78 = vmul.f32 %v76, 0.16666667
    %v79 = vsub.f32 %v56, %v77
    %v80 = vsub.f32 %v57, %v78
    %v81 = vmul.f32 %v79, %v62
    %v82 = vmul.f32 %v80, %v62
    %v83 = vmul.f32 %v81, %v81
    %v84 = vmul.f32 %v82, %v82
    %v85 = vrot.slane %v83, 4
    %v86 = vadd.f32 %v83, %v85
    %v87 = vrot.slane %v86, 2
    %v88 = vadd.f32 %v86, %v87
    %v89 = vrot.slane %v88, 1
    %v90 = vadd.f32 %v88, %v89
    %v91 = vrot.slane %v84, 4
    %v92 = vadd.f32 %v84, %v91
    %v93 = vrot.slane %v92, 2
    %v94 = vadd.f32 %v92, %v93
    %v95 = vrot.slane %v94, 1
    %v96 = vadd.f32 %v94, %v95
    %v97 = vmul.f32 %v90, 0.16666667
    %v98 = vmul.f32 %v96, 0.16666667
    %v99 = vadd.f32 %v97, 1e-05
    %v100 = vadd.f32 %v98, 1e-05
    %v101 = vrsqrt.pop %v99
    %v102 = vmul.f32 %v101, %v99
    %v103 = vmul.f32 %v102, %v101
    %v104 = vmul.f32 0.5, %v103
    %v105 = vsub.f32 1.5, %v104
    %v106 = vmul.f32 %v101, %v105
    %vm107 = vweird.f32 %v99
    %vm108 = vweird.f32 %v101
    %vm109 = vmor %vm107, %vm108
    %v110 = vsel %vm109, %v101, %v106
    %v111 = vrsqrt.pop %v100
    %v112 = vmul.f32 %v111, %v100
    %v113 = vmul.f32 %v112, %v111
    %v114 = vmul.f32 0.5, %v113
    %v115 = vsub.f32 1.5, %v114
    %v116 = vmul.f32 %v111, %v115
    %vm117 = vweird.f32 %v100
    %vm118 = vweird.f32 %v111
    %vm119 = vmor %vm117, %vm118
    %v120 = vsel %vm119, %v111, %v116
    %v121 = vmul.f32 %v79, %v110
    %v122 = vmul.f32 %v80, %v120
    %v123 = vld [vmem:[#allocation5] sm:$0x3]
    %v125 = vperm.slane %v123, 0
    %v126 = vperm.slane %v123, 1
    %v129 = vmul.f32 %v121, %v125
    %v130 = vmul.f32 %v122, %v126
    %v131 = vld [vmem:[#allocation7] sm:$0x3]
    %v133 = vperm.slane %v131, 0
    %v134 = vperm.slane %v131, 1
    %v137 = vadd.f32 %v129, %v133
    %v138 = vadd.f32 %v130, %v134
    %139 = vst [vmem:[#allocation8] sm:$0xff] %v137
    %140 = vst [vmem:[#allocation8 + $0x8] sm:$0xff] %v138
    // Predicated region
    $region26: #{tpu_custom_call.1} parent=1 // pred_check
      _
    $region27: #{tpu_custom_call.1} parent=1 // pred_check_branch
      %142 = sbr.rel (0) target = $region29
    $region28: #{tpu_custom_call.1} parent=1 // pred_region
      %144 = vsyncadd [#allocation4], 0
      %s146 = sshll.u32 [#allocation8], 4
      %s147 = int_to_ptr.vmem [resolvable:$true] %s146
      %s148 = sshll.u32 %s3, 4
      %s149 = int_to_ptr.hbm [resolvable:$true] %s148
      %151 = dma.vmem_to_hbm [thread:$0]  %s147, 256, %s149, [#allocation4]
    $region29: #{tpu_custom_call.1} parent=1 // pred_fallthru
      _
    // Predicated region
    $region30: #{tpu_custom_call.1} parent=1 // pred_check
      _
    $region31: #{tpu_custom_call.1} parent=1 // pred_check_branch
      %153 = sbr.rel (0) target = $region33
    $region32: #{tpu_custom_call.1} parent=1 // pred_region
      %155 = dma.done [#allocation4], 256
    $region33: #{tpu_custom_call.1} parent=1 // pred_fallthru
      _
    %156 = vsyncpa [#allocation3], 1
    %157 = vsyncpa [#allocation6], 1
    %158 = vsyncpa [#allocation4], 1

</llo_original>
